<compile_context>
chip_gen: v7x
topology: tpu7x:2x2x1
jax: 0.10.0
libtpu: 0.0.40
codegen_flags: <defaults>
</compile_context>

<pallas_src>
import math

import jax
import jax.numpy as jnp
from jax.experimental import pallas as pl
from jax.experimental.pallas import tpu as pltpu

_LANES = 128


def _make_bce_kernel(rows_per_block: int, m_rows: int):
    def kernel(p_ref, t_ref, out_ref, acc_ref):
        o = pl.program_id(0)          # parallel slice (per-core on v7x)
        i = pl.program_id(1)          # reduction axis
        n_inner = pl.num_programs(1)

        @pl.when(i == 0)
        def _init():
            acc_ref[...] = jnp.zeros_like(acc_ref)

        # Cast in-kernel (VPU) so the HBM->VMEM DMA moves the native dtype.
        p = p_ref[...].astype(jnp.float32)
        t = t_ref[...].astype(jnp.float32)

        # PyTorch BCELoss clamps log outputs at -100 to avoid -inf.
        log_p = jnp.maximum(jnp.log(p), -100.0)
        log_1mp = jnp.maximum(jnp.log(1.0 - p), -100.0)
        loss = -(t * log_p + (1.0 - t) * log_1mp)

        # Mask rows past the logical end of the data (ragged last block and the
        # clamped/duplicated blocks of the final parallel slice). The select
        # discards any garbage/NaN produced from uninitialized pad rows.
        logical_block = o * n_inner + i
        row_start = logical_block * rows_per_block
        row_ids = jax.lax.broadcasted_iota(jnp.int32, loss.shape, 0) + row_start
        loss = jnp.where(row_ids < m_rows, loss, 0.0)

        # Pure element-wise accumulate every step (VPU add slot, hidden under
        # DMA); all reductions are deferred to the final reduction step.
        acc_ref[...] = acc_ref[...] + loss

        @pl.when(i == n_inner - 1)
        def _finalize():
            out_ref[...] = jnp.sum(acc_ref[...], axis=0, keepdims=True)

    return kernel


def binary_cross_entropy_loss_2d(probs: jax.Array, targets: jax.Array,
                                 *, rows_per_block: int = 2048,
                                 n_parallel: int = 2) -> jax.Array:
    """BCELoss(reduction='mean') over flattened inputs.

    NOTE: `probs` must already be probabilities in [0, 1] (BCELoss, not
    BCEWithLogits) -- values outside [0, 1] produce NaN exactly as in PyTorch.
    """
    assert probs.shape == targets.shape, "probs/targets must have identical shapes"

    n_total = math.prod(probs.shape)
    p_flat = probs.reshape(-1)    # native dtype; no wrapper-side f32 cast
    t_flat = targets.reshape(-1)

    n_main = (n_total // _LANES) * _LANES
    n_tail = n_total - n_main

    # Sub-lane tail (< 128 elements) handled in plain JAX; avoids padding the
    # full flattened arrays with a jnp.concatenate copy.
    tail_sum = jnp.float32(0.0)
    if n_tail:
        tp = p_flat[n_main:].astype(jnp.float32)
        tt = t_flat[n_main:].astype(jnp.float32)
        t_log_p = jnp.maximum(jnp.log(tp), -100.0)
        t_log_1mp = jnp.maximum(jnp.log(1.0 - tp), -100.0)
        tail_sum = jnp.sum(-(tt * t_log_p + (1.0 - tt) * t_log_1mp))

    if n_main == 0:
        return tail_sum * jnp.float32(1.0 / n_total)

    m_rows = n_main // _LANES
    if n_tail:
        p_flat = p_flat[:n_main]
        t_flat = t_flat[:n_main]
    p2d = p_flat.reshape(m_rows, _LANES)
    t2d = t_flat.reshape(m_rows, _LANES)

    # Block row count: big for throughput, capped at the array extent so small
    # inputs get a single full-extent block (always a legal block shape).
    rpb = min(rows_per_block, m_rows)
    total_blocks = pl.cdiv(m_rows, rpb)

    # Leading 'parallel' axis: on v7x the two TensorCores each own a slice of
    # the reduction (independent partial sums); on v5e/v6e it simply iterates.
    n_outer = max(1, min(n_parallel, total_blocks))
    n_inner = pl.cdiv(total_blocks, n_outer)

    def idx_map(o, i):
        # Clamp so DMAs stay in bounds; duplicated blocks of the last slice are
        # zeroed in-kernel via the global row-index mask.
        return (jnp.minimum(o * n_inner + i, total_blocks - 1), 0)

    kernel = _make_bce_kernel(rpb, m_rows)

    bytes_in = n_main * (jnp.dtype(probs.dtype).itemsize
                         + jnp.dtype(targets.dtype).itemsize)
    cost = pl.CostEstimate(
        flops=8 * n_main,
        transcendentals=2 * n_main,
        bytes_accessed=bytes_in + n_outer * _LANES * 4,
    )

    partials = pl.pallas_call(
        kernel,
        out_shape=jax.ShapeDtypeStruct((n_outer, _LANES), jnp.float32),
        grid_spec=pltpu.PrefetchScalarGridSpec(
            num_scalar_prefetch=0,
            grid=(n_outer, n_inner),
            in_specs=[
                pl.BlockSpec((rpb, _LANES), idx_map),
                pl.BlockSpec((rpb, _LANES), idx_map),
            ],
            out_specs=pl.BlockSpec((1, _LANES), lambda o, i: (o, 0)),
            scratch_shapes=[pltpu.VMEM((rpb, _LANES), jnp.float32)],
        ),
        compiler_params=pltpu.CompilerParams(
            dimension_semantics=("parallel", "arbitrary"),
        ),
        cost_estimate=cost,
    )(p2d, t2d)

    total = jnp.sum(partials) + tail_sum
    return total * jnp.float32(1.0 / n_total)


def _reference_bce(probs, targets):
    p = probs.reshape(-1).astype(jnp.float32)
    t = targets.reshape(-1).astype(jnp.float32)
    log_p = jnp.maximum(jnp.log(p), -100.0)
    log_1mp = jnp.maximum(jnp.log(1.0 - p), -100.0)
    return jnp.mean(-(t * log_p + (1.0 - t) * log_1mp))


if __name__ == "__main__":
    key = jax.random.PRNGKey(0)
    k1, k2 = jax.random.split(key)

    # NCHW, small shapes: batch=2, channels=4, spatial=16x16.
    B, C, H, W = 2, 4, 16, 16
    # BCELoss expects probabilities in [0, 1]; generate them as sigmoid outputs.
    probs = jax.nn.sigmoid(jax.random.normal(k1, (B, C, H, W), dtype=jnp.float32))
    targets = (jax.random.uniform(k2, (B, C, H, W)) > 0.5).astype(jnp.float32)

    loss = binary_cross_entropy_loss_2d(probs, targets)
    loss = jax.block_until_ready(loss)

    ref = _reference_bce(probs, targets)
    assert jnp.allclose(loss, ref, rtol=1e-5, atol=1e-6), (loss, ref)

    print("KERNEL_OK")
</pallas_src>

<mosaic_0001>
module attributes {stable_mosaic.version = 11 : i64} {
  func.func @kernel(%arg0: i32, %arg1: i32, %arg2: memref<16x128xf32, #tpu.memory_space<vmem>>, %arg3: memref<16x128xf32, #tpu.memory_space<vmem>>, %arg4: memref<1x128xf32, #tpu.memory_space<vmem>>, %arg5: memref<16x128xf32, #tpu.memory_space<vmem>>) attributes {dimension_semantics = [#tpu.dimension_semantics<parallel>, #tpu.dimension_semantics<arbitrary>], iteration_bounds = array<i64: 1, 1>, scalar_prefetch = 0 : i64, scratch_operands = 1 : i64, tpu.core_type = #tpu.core_type<tc>, window_params = [{transform_indices = @transform_0, window_bounds = array<i64: 16, 128>}, {transform_indices = @transform_1, window_bounds = array<i64: 16, 128>}, {transform_indices = @transform_2, window_bounds = array<i64: 1, 128>}]} {
    %c0_i32 = arith.constant 0 : i32
    %0 = arith.cmpi eq, %arg1, %c0_i32 : i32
    %1 = arith.extui %0 : i1 to i32
    %c0_i32_0 = arith.constant 0 : i32
    %2 = arith.cmpi ne, %1, %c0_i32_0 : i32
    scf.if %2 {
      %cst_16 = arith.constant 0.000000e+00 : f32
      %36 = vector.broadcast %cst_16 : f32 to vector<16x128xf32>
      %c0_17 = arith.constant 0 : index
      %c0_18 = arith.constant 0 : index
      %37 = vector.load %arg5[%c0_17, %c0_18] : memref<16x128xf32, #tpu.memory_space<vmem>>, vector<16x128xf32>
      tpu.vector_store %arg5[%c0_17, %c0_18], %36 {strides = array<i32>} : memref<16x128xf32, #tpu.memory_space<vmem>>, vector<16x128xf32>,
    } else {
    }
    %c0 = arith.constant 0 : index
    %c0_1 = arith.constant 0 : index
    %3 = vector.load %arg2[%c0, %c0_1] : memref<16x128xf32, #tpu.memory_space<vmem>>, vector<16x128xf32>
    %c0_2 = arith.constant 0 : index
    %c0_3 = arith.constant 0 : index
    %4 = vector.load %arg3[%c0_2, %c0_3] : memref<16x128xf32, #tpu.memory_space<vmem>>, vector<16x128xf32>
    %5 = math.log %3 : vector<16x128xf32>
    %cst = arith.constant -1.000000e+02 : f32
    %6 = vector.broadcast %cst : f32 to vector<16x128xf32>
    %7 = arith.maximumf %5, %6 : vector<16x128xf32>
    %cst_4 = arith.constant 1.000000e+00 : f32
    %8 = vector.broadcast %cst_4 : f32 to vector<16x128xf32>
    %9 = arith.subf %8, %3 : vector<16x128xf32>
    %10 = math.log %9 : vector<16x128xf32>
    %cst_5 = arith.constant -1.000000e+02 : f32
    %11 = vector.broadcast %cst_5 : f32 to vector<16x128xf32>
    %12 = arith.maximumf %10, %11 : vector<16x128xf32>
    %13 = arith.mulf %4, %7 : vector<16x128xf32>
    %cst_6 = arith.constant 1.000000e+00 : f32
    %14 = vector.broadcast %cst_6 : f32 to vector<16x128xf32>
    %15 = arith.subf %14, %4 : vector<16x128xf32>
    %16 = arith.mulf %15, %12 : vector<16x128xf32>
    %17 = arith.addf %13, %16 : vector<16x128xf32>
    %cst_7 = arith.constant 0.000000e+00 : f32
    %18 = vector.broadcast %cst_7 : f32 to vector<16x128xf32>
    %19 = arith.subf %18, %17 : vector<16x128xf32>
    %c1_i32 = arith.constant 1 : i32
    %20 = arith.muli %arg0, %c1_i32 : i32
    %21 = arith.addi %20, %arg1 : i32
    %c16_i32 = arith.constant 16 : i32
    %22 = arith.muli %21, %c16_i32 : i32
    %23 = tpu.iota {dimensions = array<i32: 0>} : vector<16x128xi32>
    %24 = vector.broadcast %22 : i32 to vector<16x128xi32>
    %25 = arith.addi %23, %24 : vector<16x128xi32>
    %c16_i32_8 = arith.constant 16 : i32
    %26 = vector.broadcast %c16_i32_8 : i32 to vector<16x128xi32>
    %27 = arith.cmpi slt, %25, %26 : vector<16x128xi32>
    %cst_9 = arith.constant 0.000000e+00 : f32
    %28 = vector.broadcast %cst_9 : f32 to vector<16x128xf32>
    %29 = arith.select %27, %19, %28 : vector<16x128xi1>, vector<16x128xf32>
    %c0_10 = arith.constant 0 : index
    %c0_11 = arith.constant 0 : index
    %30 = vector.load %arg5[%c0_10, %c0_11] : memref<16x128xf32, #tpu.memory_space<vmem>>, vector<16x128xf32>
    %31 = arith.addf %30, %29 : vector<16x128xf32>
    %c0_12 = arith.constant 0 : index
    %c0_13 = arith.constant 0 : index
    %32 = vector.load %arg5[%c0_12, %c0_13] : memref<16x128xf32, #tpu.memory_space<vmem>>, vector<16x128xf32>
    tpu.vector_store %arg5[%c0_12, %c0_13], %31 {strides = array<i32>} : memref<16x128xf32, #tpu.memory_space<vmem>>, vector<16x128xf32>,
    %c0_i32_14 = arith.constant 0 : i32
    %33 = arith.cmpi eq, %arg1, %c0_i32_14 : i32
    %34 = arith.extui %33 : i1 to i32
    %c0_i32_15 = arith.constant 0 : i32
    %35 = arith.cmpi ne, %34, %c0_i32_15 : i32
    scf.if %35 {
      %c0_16 = arith.constant 0 : index
      %c0_17 = arith.constant 0 : index
      %36 = vector.load %arg5[%c0_16, %c0_17] : memref<16x128xf32, #tpu.memory_space<vmem>>, vector<16x128xf32>
      %cst_18 = arith.constant dense<0.000000e+00> : vector<128xf32>
      %37 = vector.multi_reduction <add>, %36, %cst_18 [0] : vector<16x128xf32> to vector<128xf32>
      %38 = vector.shape_cast %37 : vector<128xf32> to vector<1x128xf32>
      %c0_19 = arith.constant 0 : index
      %c0_20 = arith.constant 0 : index
      %39 = vector.load %arg4[%c0_19, %c0_20] : memref<1x128xf32, #tpu.memory_space<vmem>>, vector<1x128xf32>
      tpu.vector_store %arg4[%c0_19, %c0_20], %38 {strides = array<i32>} : memref<1x128xf32, #tpu.memory_space<vmem>>, vector<1x128xf32>,
    } else {
    }
    return
  }
  func.func @transform_0(%arg0: i32, %arg1: i32) -> (i32, i32) {
    %c1_i32 = arith.constant 1 : i32
    %0 = arith.muli %arg0, %c1_i32 : i32
    %1 = arith.addi %0, %arg1 : i32
    %c0_i32 = arith.constant 0 : i32
    %2 = arith.minsi %1, %c0_i32 : i32
    %c0_i32_0 = arith.constant 0 : i32
    %c0_i32_1 = arith.constant 0 : i32
    return %2, %c0_i32_0 : i32, i32
  }
  func.func @transform_1(%arg0: i32, %arg1: i32) -> (i32, i32) {
    %c1_i32 = arith.constant 1 : i32
    %0 = arith.muli %arg0, %c1_i32 : i32
    %1 = arith.addi %0, %arg1 : i32
    %c0_i32 = arith.constant 0 : i32
    %2 = arith.minsi %1, %c0_i32 : i32
    %c0_i32_0 = arith.constant 0 : i32
    %c0_i32_1 = arith.constant 0 : i32
    return %2, %c0_i32_0 : i32, i32
  }
  func.func @transform_2(%arg0: i32, %arg1: i32) -> (i32, i32) {
    %c0_i32 = arith.constant 0 : i32
    %c0_i32_0 = arith.constant 0 : i32
    return %arg0, %c0_i32 : i32, i32
  }
}

</mosaic_0001>

<llo_original>
// kernel: tpu_custom_call.1
$region0: #{tpu_custom_call.1}
  #allocation0 [shape = 'u32[]', space=smem, size = 0x4, offset = 0x4, fixed_abs, tag = 'smem constant byte address 0x4 - core index']
  #allocation1 [shape = 'u32[144,128]{1,0:T(1,128)}', space=vmem, size = 0x12000, scoped, tag = 'internal scratch']
  #allocation2 [shape = 'f32[16,128]{1,0:T(8,128)}', space=vmem, size = 0x2000, scoped, tag = 'scratch operand']
  %s0 = inlined_call_operand.hbm [shape: f32[16,128], index: 0, kind: input, shape index: {}]
  %s1 = inlined_call_operand.hbm [shape: f32[16,128], index: 1, kind: input, shape index: {}]
  %s2 = inlined_call_operand.hbm [shape: f32[1,128], index: 2, kind: output, shape index: {}]
  %s3 = sld [smem:[#allocation0]]
  $region34: #{tpu_custom_call.1} parent=0
    _
  %s5 = ssub.s32 1, %s3
  %s6 = scalar_select 0, %s5, %s3
  $region1: #{tpu_custom_call.1} parent=0
    #allocation3 [shape = 'u8[8192]{0}', space=vmem, size = 0x2000, scoped, tag = 'input window, operand 0, single buffered']
    #allocation4 [shape = 's32[1]{0}', space=sflag, size = 0x4, scoped, tag = 'scoped memory for tpu_custom_call.1']
    #allocation5 [shape = 's32[1]{0}', space=sflag, size = 0x4, scoped, tag = 'scoped memory for tpu_custom_call.1']
    #allocation6 [shape = 'u8[8192]{0}', space=vmem, size = 0x2000, scoped, tag = 'input window, operand 1, single buffered']
    #allocation7 [shape = 's32[1]{0}', space=sflag, size = 0x4, scoped, tag = 'scoped memory for tpu_custom_call.1']
    #allocation8 [shape = 'u8[512]{0}', space=vmem, size = 0x400, scoped, tag = 'output window, operand 0, single buffered']
    %7 = vsyncpa [#allocation4], 0
    %8 = vsyncpa [#allocation7], 0
    %9 = vsyncpa [#allocation5], 0
    // Predicated region
    $region2: #{tpu_custom_call.1} parent=1 // pred_check
      _
    $region3: #{tpu_custom_call.1} parent=1 // pred_check_branch
      %11 = sbr.rel (0) target = $region5
    $region4: #{tpu_custom_call.1} parent=1 // pred_region
      %s12 = sadd.s32 0, 0
      %p13 = scmp.lt.s32.totalorder %s12, 0
      %s14 = scalar_select %p13, %s12, 0
      %s15 = smul.u32 2, %s14
      %s17 = ssub.s32 256, 256
      %18 = vsyncadd [#allocation4], %s17
      %s19 = smul.addr %s15, 128
      %s20 = scalar_lea.hbm %s0, %s19
      %s21 = sshll.u32 [#allocation3], 4
      %s22 = int_to_ptr.vmem [resolvable:$true] %s21
      %27 = dma.hbm_to_vmem [thread:$0]  %s20, 256, %s22, [#allocation4], 128, 128, 8
    $region5: #{tpu_custom_call.1} parent=1 // pred_fallthru
      _
    // Predicated region
    $region6: #{tpu_custom_call.1} parent=1 // pred_check
      _
    $region7: #{tpu_custom_call.1} parent=1 // pred_check_branch
      %29 = sbr.rel (0) target = $region9
    $region8: #{tpu_custom_call.1} parent=1 // pred_region
      %s30 = sadd.s32 0, 0
      %p31 = scmp.lt.s32.totalorder %s30, 0
      %s32 = scalar_select %p31, %s30, 0
      %s33 = smul.u32 2, %s32
      %s35 = ssub.s32 256, 256
      %36 = vsyncadd [#allocation7], %s35
      %s37 = smul.addr %s33, 128
      %s38 = scalar_lea.hbm %s1, %s37
      %s39 = sshll.u32 [#allocation6], 4
      %s40 = int_to_ptr.vmem [resolvable:$true] %s39
      %45 = dma.hbm_to_vmem [thread:$0]  %s38, 256, %s40, [#allocation7], 128, 128, 8
    $region9: #{tpu_custom_call.1} parent=1 // pred_fallthru
      _
    // Predicated region
    $region10: #{tpu_custom_call.1} parent=1 // pred_check
      _
    $region11: #{tpu_custom_call.1} parent=1 // pred_check_branch
      %47 = sbr.rel (0) target = $region13
    $region12: #{tpu_custom_call.1} parent=1 // pred_region
      %48 = dma.done [#allocation4], 256
    $region13: #{tpu_custom_call.1} parent=1 // pred_fallthru
      _
    // Predicated region
    $region14: #{tpu_custom_call.1} parent=1 // pred_check
      _
    $region15: #{tpu_custom_call.1} parent=1 // pred_check_branch
      %50 = sbr.rel (0) target = $region17
    $region16: #{tpu_custom_call.1} parent=1 // pred_region
      %51 = dma.done [#allocation7], 256
    $region17: #{tpu_custom_call.1} parent=1 // pred_fallthru
      _
    %s52 = sadd.s32 0, 0
    %p53 = scmp.lt.s32.totalorder %s52, 0
    %s54 = scalar_select %p53, %s52, 0
    %s55 = smul.u32 2, %s54
    %s56 = sadd.s32 0, 0
    %p57 = scmp.lt.s32.totalorder %s56, 0
    %s58 = scalar_select %p57, %s56, 0
    %s59 = smul.u32 2, %s58
    %p60 = scmp.eq.s32.totalorder 0, 0
    // Predicated region
    $region18: #{tpu_custom_call.1} parent=1 // pred_check
      %p61 = pneg %p60
    $region19: #{tpu_custom_call.1} parent=1 // pred_check_branch
      %63 = sbr.rel (%p61) target = $region21
    $region20: #{tpu_custom_call.1} parent=1 // pred_region
      %64 = vst [vmem:[#allocation2] sm:$0xff] 0.0
      %65 = vst [vmem:[#allocation2 + $0x8] sm:$0xff] 0.0
    $region21: #{tpu_custom_call.1} parent=1 // pred_fallthru
      _
    %v66 = vld [vmem:[#allocation3] sm:$0xff]
    %v67 = vld [vmem:[#allocation3 + $0x8] sm:$0xff]
    %v68 = vld [vmem:[#allocation6] sm:$0xff]
    %v69 = vld [vmem:[#allocation6 + $0x8] sm:$0xff]
    %v70 = vlog2.pop %v66
    %v71 = vmul.f32 %v70, 0.6931472
    %v72 = vlog2.pop %v67
    %v73 = vmul.f32 %v72, 0.6931472
    %v74 = vmax.f32 %v71, -100.0
    %v75 = vmax.f32 %v73, -100.0
    %v76 = vsub.f32 1.0, %v66
    %v77 = vsub.f32 1.0, %v67
    %v78 = vlog2.pop %v76
    %v79 = vmul.f32 %v78, 0.6931472
    %v80 = vlog2.pop %v77
    %v81 = vmul.f32 %v80, 0.6931472
    %v82 = vmax.f32 %v79, -100.0
    %v83 = vmax.f32 %v81, -100.0
    %v84 = vmul.f32 %v68, %v74
    %v85 = vmul.f32 %v69, %v75
    %v86 = vsub.f32 1.0, %v68
    %v87 = vsub.f32 1.0, %v69
    %v88 = vmul.f32 %v86, %v82
    %v89 = vmul.f32 %v87, %v83
    %v90 = vadd.f32 %v84, %v88
    %v91 = vadd.f32 %v85, %v89
    %v92 = vsub.f32 0.0, %v90
    %v93 = vsub.f32 0.0, %v91
    %s94 = sadd.s32 0, 0
    %s95 = smul.u32 %s94, 16
    %v96 = vlaneseq
    %v97 = vshrl.u32 %v96, 7
    %v98 = vadd.s32 %v97, 8
    %v99 = vstv %s95
    %v100 = vadd.s32 %v97, %v99
    %v101 = vadd.s32 %v98, %v99
    %vm102 = vcmp.lt.s32.totalorder %v100, 16
    %vm103 = vcmp.lt.s32.totalorder %v101, 16
    %v104 = vsel %vm102, %v92, 0.0
    %v105 = vsel %vm103, %v93, 0.0
    %v106 = vld [vmem:[#allocation2] sm:$0xff]
    %v107 = vld [vmem:[#allocation2 + $0x8] sm:$0xff]
    %v108 = vadd.f32 %v106, %v104
    %v109 = vadd.f32 %v107, %v105
    %110 = vst [vmem:[#allocation2] sm:$0xff] %v108
    %111 = vst [vmem:[#allocation2 + $0x8] sm:$0xff] %v109
    // Predicated region
    $region22: #{tpu_custom_call.1} parent=1 // pred_check
      %p112 = pneg %p60
    $region23: #{tpu_custom_call.1} parent=1 // pred_check_branch
      %114 = sbr.rel (%p112) target = $region25
    $region24: #{tpu_custom_call.1} parent=1 // pred_region
      %v115 = vld [vmem:[#allocation2] sm:$0xff]
      %v116 = vld [vmem:[#allocation2 + $0x8] sm:$0xff]
      %v117 = vadd.f32 %v115, %v116
      %v118 = vrot.slane %v117, 4
      %v119 = vadd.f32 %v117, %v118
      %v120 = vrot.slane %v119, 2
      %v121 = vadd.f32 %v119, %v120
      %v122 = vrot.slane %v121, 1
      %v123 = vadd.f32 %v121, %v122
      %124 = vst [vmem:[#allocation8] sm:$0x1] %v123
    $region25: #{tpu_custom_call.1} parent=1 // pred_fallthru
      _
    // Predicated region
    $region26: #{tpu_custom_call.1} parent=1 // pred_check
      _
    $region27: #{tpu_custom_call.1} parent=1 // pred_check_branch
      %126 = sbr.rel (0) target = $region29
    $region28: #{tpu_custom_call.1} parent=1 // pred_region
      %s128 = ssub.s32 16, 16
      %129 = vsyncadd [#allocation5], %s128
      %s131 = sshll.u32 [#allocation8], 4
      %s132 = int_to_ptr.vmem [resolvable:$true] %s131
      %134 = dma.vmem_to_hbm [thread:$0]  %s132, 16, %s2, [#allocation5]
    $region29: #{tpu_custom_call.1} parent=1 // pred_fallthru
      _
    // Predicated region
    $region30: #{tpu_custom_call.1} parent=1 // pred_check
      _
    $region31: #{tpu_custom_call.1} parent=1 // pred_check_branch
      %136 = sbr.rel (0) target = $region33
    $region32: #{tpu_custom_call.1} parent=1 // pred_region
      %137 = dma.done [#allocation5], 16
    $region33: #{tpu_custom_call.1} parent=1 // pred_fallthru
      _
    %138 = vsyncpa [#allocation4], 1
    %139 = vsyncpa [#allocation7], 1
    %140 = vsyncpa [#allocation5], 1

</llo_original>
